<compile_context>
chip_gen: v5e
topology: v5e:2x2
jax: 0.10.0
libtpu: 0.0.40
codegen_flags: <defaults>
</compile_context>

<pallas_src>
import jax
import jax.numpy as jnp
from jax.experimental import pallas as pl
from jax.experimental.pallas import tpu as pltpu


def _round_up(x, m):
    return ((x + m - 1) // m) * m


def _vtbpr_kernel(ug_ref, tt_ref, ub_ref, ig_ref, tf_ref, ib_ref, out_ref):
    # Feature-major blocks: (H, bt) streams, (1, bt) f32 betas, (1, bt) f32 out.
    ug = ug_ref[...].astype(jnp.float32)
    tt = tt_ref[...].astype(jnp.float32)
    ig = ig_ref[...].astype(jnp.float32)
    tf = tf_ref[...].astype(jnp.float32)
    dots = jnp.sum(ug * ig + tt * tf, axis=0, keepdims=True)  # (1, bt) f32
    out_ref[...] = dots + ub_ref[...] + ib_ref[...]


def vtbpr_scores_pallas(ug, tt, ub, ig, tf, ib, *, b_tile=8192):
    """Feature-major inputs:
         ug, tt, ig, tf : (H, B)  user_gama / theta_user_text / item_gama / text feats
         ub, ib         : (1, B)  float32 betas
       Returns (B,) float32 scores."""
    H, B = ug.shape
    assert tt.shape == (H, B) and ig.shape == (H, B) and tf.shape == (H, B)
    assert ub.shape == (1, B) and ib.shape == (1, B)

    # Tiny batches: pad up to one lane width (<=127 cols, negligible) so the
    # block never exceeds the array.  Larger batches are never padded; the
    # partial tail block is handled by Pallas masking instead.
    if B < 128:
        pad = 128 - B
        padc = lambda a: jnp.pad(a, ((0, 0), (0, pad)))
        ug, tt, ub, ig, tf, ib = (padc(a) for a in (ug, tt, ub, ig, tf, ib))
    B_eff = ug.shape[1]

    # Batch tile: multiple of 128, <= batch (block never exceeds array),
    # big enough to amortize the ~0.35us/step overhead, and capped at
    # ceil(B/2) so v7x's two TensorCores both get grid steps.
    bt = min(
        b_tile,
        (B_eff // 128) * 128,
        max(128, _round_up(-(-B_eff // 2), 128)),
    )
    grid = pl.cdiv(B_eff, bt)

    stream_bytes = jnp.dtype(ug.dtype).itemsize
    cost = pl.CostEstimate(
        flops=4 * B_eff * H,
        transcendentals=0,
        bytes_accessed=4 * B_eff * H * stream_bytes + 3 * B_eff * 4,
    )

    h_spec = pl.BlockSpec((H, bt), lambda i: (0, i))
    b_spec = pl.BlockSpec((1, bt), lambda i: (0, i))

    out = pl.pallas_call(
        _vtbpr_kernel,
        out_shape=jax.ShapeDtypeStruct((1, B_eff), jnp.float32),
        grid_spec=pltpu.PrefetchScalarGridSpec(
            num_scalar_prefetch=0,
            grid=(grid,),
            in_specs=[h_spec, h_spec, b_spec, h_spec, h_spec, b_spec],
            out_specs=b_spec,
        ),
        compiler_params=pltpu.CompilerParams(
            dimension_semantics=("parallel",),
        ),
        cost_estimate=cost,
    )(ug, tt, ub, ig, tf, ib)
    return out[0, :B]


class VTBPRParams:
    """Deterministic re-implementation of VTBPR.__init__ parameter shapes.
       All weights ~ Uniform(0, 0.01), as in init.uniform_(w, 0, 0.01).
       Tables are stored feature-major (H, n) so gathers emit (H, B) directly."""

    def __init__(self, user_set, item_set, hidden_dim=32, key=None):
        self.hidden_dim = hidden_dim
        self.user_set = list(user_set)
        self.item_set = list(item_set)
        self.user_idx = {u: i for i, u in enumerate(self.user_set)}
        self.item_idx = {it: i for i, it in enumerate(self.item_set)}
        nU, nI, H = len(self.user_set), len(self.item_set), hidden_dim

        keys = jax.random.split(key, 6)
        u = lambda k, shape: jax.random.uniform(k, shape, jnp.float32, 0.0, 0.01)
        self.user_gama = u(keys[0], (H, nU))
        self.item_gama = u(keys[1], (H, nI))
        self.user_beta = u(keys[2], (1, nU))
        self.item_beta = u(keys[3], (1, nI))
        self.theta_user_visual = u(keys[4], (H, nU))  # unused in forward (as in PyTorch)
        self.theta_user_text = u(keys[5], (H, nU))

    def forward(self, users, items, visual_features, textural_features,
                *, stream_dtype=jnp.bfloat16):
        # Glue: host-side index lookup + embedding gathers in plain JAX; the hot
        # path (fused dot products + betas) runs in the Pallas kernel.
        uidx = jnp.array([self.user_idx[u] for u in users], dtype=jnp.int32)
        iidx = jnp.array([self.item_idx[i] for i in items], dtype=jnp.int32)
        B, H = len(users), self.hidden_dim
        # Cast the (tiny) tables before the gather so gathered (H, B) streams
        # land in HBM already at stream_dtype (bf16 halves kernel HBM bytes).
        ug = jnp.take(self.user_gama.astype(stream_dtype), uidx, axis=1)
        tt = jnp.take(self.theta_user_text.astype(stream_dtype), uidx, axis=1)
        ig = jnp.take(self.item_gama.astype(stream_dtype), iidx, axis=1)
        # Betas stay f32: negligible bytes, avoids quantizing near-tie biases.
        ub = jnp.take(self.user_beta, uidx, axis=1)
        ib = jnp.take(self.item_beta, iidx, axis=1)
        # textural_features arrives batch-major (B, H) as in the PyTorch forward;
        # transpose + cast fuse into one small copy.  visual_features unused.
        tf = textural_features.reshape(B, H).T.astype(stream_dtype)
        return vtbpr_scores_pallas(ug, tt, ub, ig, tf, ib)


def _reference_forward(params, users, items, visual_features, textural_features):
    uidx = jnp.array([params.user_idx[u] for u in users], dtype=jnp.int32)
    iidx = jnp.array([params.item_idx[i] for i in items], dtype=jnp.int32)
    ug = jnp.take(params.user_gama, uidx, axis=1)            # (H, B)
    ig = jnp.take(params.item_gama, iidx, axis=1)            # (H, B)
    tt = jnp.take(params.theta_user_text, uidx, axis=1)      # (H, B)
    ub = jnp.take(params.user_beta, uidx, axis=1)[0]         # (B,)
    ib = jnp.take(params.item_beta, iidx, axis=1)[0]         # (B,)
    B = len(users)
    tf = textural_features.reshape(B, params.hidden_dim).T   # (H, B)
    return ib + ub + jnp.sum(ug * ig, axis=0) + jnp.sum(tt * tf, axis=0)


if __name__ == "__main__":
    key = jax.random.PRNGKey(0)
    k_params, k_text, k_vis = jax.random.split(key, 3)

    hidden_dim = 32
    user_set = [f"user_{i}" for i in range(16)]
    item_set = [f"item_{i}" for i in range(24)]
    params = VTBPRParams(user_set, item_set, hidden_dim=hidden_dim, key=k_params)

    batch = 8
    users = [user_set[(3 * b + 1) % len(user_set)] for b in range(batch)]
    items = [item_set[(5 * b + 2) % len(item_set)] for b in range(batch)]

    textural_features = jax.random.normal(k_text, (batch, hidden_dim), jnp.float32)
    visual_features = jax.random.normal(k_vis, (batch, hidden_dim), jnp.float32)

    ref = _reference_forward(params, users, items, visual_features, textural_features)

    # f32 stream path: tight check against the pure-JAX reference.
    out_f32 = params.forward(users, items, visual_features, textural_features,
                             stream_dtype=jnp.float32)
    out_f32 = jax.block_until_ready(out_f32)
    assert out_f32.shape == (batch,)
    assert jnp.allclose(out_f32, ref, atol=1e-5, rtol=1e-5)

    # Default bf16-stream path (halves HBM bytes of the gathered streams);
    # f32 betas + f32 accumulation inside the kernel.
    out_bf16 = params.forward(users, items, visual_features, textural_features)
    out_bf16 = jax.block_until_ready(out_bf16)
    assert out_bf16.shape == (batch,)
    assert jnp.allclose(out_bf16, ref, atol=5e-3, rtol=5e-2)

    print("KERNEL_OK")
</pallas_src>

<mosaic_0001>
module attributes {stable_mosaic.version = 11 : i64} {
  func.func @_vtbpr_kernel(%arg0: i32, %arg1: memref<32x128xf32, #tpu.memory_space<vmem>>, %arg2: memref<32x128xf32, #tpu.memory_space<vmem>>, %arg3: memref<1x128xf32, #tpu.memory_space<vmem>>, %arg4: memref<32x128xf32, #tpu.memory_space<vmem>>, %arg5: memref<32x128xf32, #tpu.memory_space<vmem>>, %arg6: memref<1x128xf32, #tpu.memory_space<vmem>>, %arg7: memref<1x128xf32, #tpu.memory_space<vmem>>) attributes {dimension_semantics = [#tpu.dimension_semantics<parallel>], iteration_bounds = array<i64: 1>, scalar_prefetch = 0 : i64, scratch_operands = 0 : i64, tpu.core_type = #tpu.core_type<tc>, window_params = [{transform_indices = @transform_0, window_bounds = array<i64: 32, 128>}, {transform_indices = @transform_1, window_bounds = array<i64: 32, 128>}, {transform_indices = @transform_2, window_bounds = array<i64: 1, 128>}, {transform_indices = @transform_3, window_bounds = array<i64: 32, 128>}, {transform_indices = @transform_4, window_bounds = array<i64: 32, 128>}, {transform_indices = @transform_5, window_bounds = array<i64: 1, 128>}, {transform_indices = @transform_6, window_bounds = array<i64: 1, 128>}]} {
    %c0 = arith.constant 0 : index
    %c0_0 = arith.constant 0 : index
    %0 = vector.load %arg1[%c0, %c0_0] : memref<32x128xf32, #tpu.memory_space<vmem>>, vector<32x128xf32>
    %c0_1 = arith.constant 0 : index
    %c0_2 = arith.constant 0 : index
    %1 = vector.load %arg2[%c0_1, %c0_2] : memref<32x128xf32, #tpu.memory_space<vmem>>, vector<32x128xf32>
    %c0_3 = arith.constant 0 : index
    %c0_4 = arith.constant 0 : index
    %2 = vector.load %arg4[%c0_3, %c0_4] : memref<32x128xf32, #tpu.memory_space<vmem>>, vector<32x128xf32>
    %c0_5 = arith.constant 0 : index
    %c0_6 = arith.constant 0 : index
    %3 = vector.load %arg5[%c0_5, %c0_6] : memref<32x128xf32, #tpu.memory_space<vmem>>, vector<32x128xf32>
    %4 = arith.mulf %0, %2 : vector<32x128xf32>
    %5 = arith.mulf %1, %3 : vector<32x128xf32>
    %6 = arith.addf %4, %5 : vector<32x128xf32>
    %cst = arith.constant dense<0.000000e+00> : vector<128xf32>
    %7 = vector.multi_reduction <add>, %6, %cst [0] : vector<32x128xf32> to vector<128xf32>
    %8 = vector.shape_cast %7 : vector<128xf32> to vector<1x128xf32>
    %c0_7 = arith.constant 0 : index
    %c0_8 = arith.constant 0 : index
    %9 = vector.load %arg3[%c0_7, %c0_8] : memref<1x128xf32, #tpu.memory_space<vmem>>, vector<1x128xf32>
    %10 = arith.addf %8, %9 : vector<1x128xf32>
    %c0_9 = arith.constant 0 : index
    %c0_10 = arith.constant 0 : index
    %11 = vector.load %arg6[%c0_9, %c0_10] : memref<1x128xf32, #tpu.memory_space<vmem>>, vector<1x128xf32>
    %12 = arith.addf %10, %11 : vector<1x128xf32>
    %c0_11 = arith.constant 0 : index
    %c0_12 = arith.constant 0 : index
    %13 = vector.load %arg7[%c0_11, %c0_12] : memref<1x128xf32, #tpu.memory_space<vmem>>, vector<1x128xf32>
    tpu.vector_store %arg7[%c0_11, %c0_12], %12 {strides = array<i32>} : memref<1x128xf32, #tpu.memory_space<vmem>>, vector<1x128xf32>,
    return
  }
  func.func @transform_0(%arg0: i32) -> (i32, i32) {
    %c0_i32 = arith.constant 0 : i32
    %c0_i32_0 = arith.constant 0 : i32
    return %c0_i32, %arg0 : i32, i32
  }
  func.func @transform_1(%arg0: i32) -> (i32, i32) {
    %c0_i32 = arith.constant 0 : i32
    %c0_i32_0 = arith.constant 0 : i32
    return %c0_i32, %arg0 : i32, i32
  }
  func.func @transform_2(%arg0: i32) -> (i32, i32) {
    %c0_i32 = arith.constant 0 : i32
    %c0_i32_0 = arith.constant 0 : i32
    return %c0_i32, %arg0 : i32, i32
  }
  func.func @transform_3(%arg0: i32) -> (i32, i32) {
    %c0_i32 = arith.constant 0 : i32
    %c0_i32_0 = arith.constant 0 : i32
    return %c0_i32, %arg0 : i32, i32
  }
  func.func @transform_4(%arg0: i32) -> (i32, i32) {
    %c0_i32 = arith.constant 0 : i32
    %c0_i32_0 = arith.constant 0 : i32
    return %c0_i32, %arg0 : i32, i32
  }
  func.func @transform_5(%arg0: i32) -> (i32, i32) {
    %c0_i32 = arith.constant 0 : i32
    %c0_i32_0 = arith.constant 0 : i32
    return %c0_i32, %arg0 : i32, i32
  }
  func.func @transform_6(%arg0: i32) -> (i32, i32) {
    %c0_i32 = arith.constant 0 : i32
    %c0_i32_0 = arith.constant 0 : i32
    return %c0_i32, %arg0 : i32, i32
  }
}

</mosaic_0001>

<llo_original>
// kernel: tpu_custom_call.1
$region0: #{tpu_custom_call.1}
  #allocation0 [shape = 'u32[]', space=smem, size = 0x4, offset = 0x4, fixed_abs, tag = 'smem constant byte address 0x4 - core index']
  #allocation1 [shape = 'u32[72,128]{1,0:T(1,128)}', space=vmem, size = 0x9000, scoped, tag = 'internal scratch']
  %s0 = inlined_call_operand.hbm [shape: f32[32,128], index: 0, kind: input, shape index: {}]
  %s1 = inlined_call_operand.hbm [shape: f32[32,128], index: 1, kind: input, shape index: {}]
  %s2 = inlined_call_operand.vmem [shape: f32[1,128], index: 2, kind: input, shape index: {}]
  %s3 = inlined_call_operand.hbm [shape: f32[32,128], index: 3, kind: input, shape index: {}]
  %s4 = inlined_call_operand.hbm [shape: f32[32,128], index: 4, kind: input, shape index: {}]
  %s5 = inlined_call_operand.vmem [shape: f32[1,128], index: 5, kind: input, shape index: {}]
  %s6 = inlined_call_operand.hbm [shape: f32[1,128], index: 6, kind: output, shape index: {}]
  %s7 = sld [smem:[#allocation0]]
  $region50: #{tpu_custom_call.1} parent=0
    _
  %s9 = ssub.s32 1, %s7
  %s10 = scalar_select 0, %s9, %s7
  $region1: #{tpu_custom_call.1} parent=0
    #allocation2 [shape = 'u8[16384]{0}', space=vmem, size = 0x4000, scoped, tag = 'input window, operand 0, single buffered']
    #allocation3 [shape = 's32[1]{0}', space=sflag, size = 0x4, scoped, tag = 'scoped memory for tpu_custom_call.1']
    #allocation4 [shape = 's32[1]{0}', space=sflag, size = 0x4, scoped, tag = 'scoped memory for tpu_custom_call.1']
    #allocation5 [shape = 'u8[16384]{0}', space=vmem, size = 0x4000, scoped, tag = 'input window, operand 1, single buffered']
    #allocation6 [shape = 's32[1]{0}', space=sflag, size = 0x4, scoped, tag = 'scoped memory for tpu_custom_call.1']
    #allocation7 [shape = 'u8[16384]{0}', space=vmem, size = 0x4000, scoped, tag = 'input window, operand 3, single buffered']
    #allocation8 [shape = 'u8[16384]{0}', space=vmem, size = 0x4000, scoped, tag = 'input window, operand 4, single buffered']
    #allocation9 [shape = 's32[1]{0}', space=sflag, size = 0x4, scoped, tag = 'scoped memory for tpu_custom_call.1']
    #allocation10 [shape = 'u8[512]{0}', space=vmem, size = 0x400, scoped, tag = 'output window, operand 0, single buffered']
    %11 = vsyncpa [#allocation3], 0
    %12 = vsyncpa [#allocation6], 0
    %13 = vsyncpa [#allocation9], 0
    %14 = vsyncpa [#allocation4], 0
    // Predicated region
    $region2: #{tpu_custom_call.1} parent=1 // pred_check
      _
    $region3: #{tpu_custom_call.1} parent=1 // pred_check_branch
      %16 = sbr.rel (0) target = $region5
    $region4: #{tpu_custom_call.1} parent=1 // pred_region
      %18 = vsyncadd [#allocation3], 0
      %s19 = sshll.u32 %s0, 4
      %s20 = int_to_ptr.hbm [resolvable:$true] %s19
      %s21 = sshll.u32 [#allocation2], 4
      %s22 = int_to_ptr.vmem [resolvable:$true] %s21
      %27 = dma.hbm_to_vmem [thread:$0]  %s20, 512, %s22, [#allocation3], 128, 128, 8
    $region5: #{tpu_custom_call.1} parent=1 // pred_fallthru
      _
    // Predicated region
    $region6: #{tpu_custom_call.1} parent=1 // pred_check
      _
    $region7: #{tpu_custom_call.1} parent=1 // pred_check_branch
      %29 = sbr.rel (0) target = $region9
    $region8: #{tpu_custom_call.1} parent=1 // pred_region
      %31 = vsyncadd [#allocation6], 0
      %s32 = sshll.u32 %s1, 4
      %s33 = int_to_ptr.hbm [resolvable:$true] %s32
      %s34 = sshll.u32 [#allocation5], 4
      %s35 = int_to_ptr.vmem [resolvable:$true] %s34
      %40 = dma.hbm_to_vmem [thread:$0]  %s33, 512, %s35, [#allocation6], 128, 128, 8
    $region9: #{tpu_custom_call.1} parent=1 // pred_fallthru
      _
    // Predicated region
    $region10: #{tpu_custom_call.1} parent=1 // pred_check
      _
    $region11: #{tpu_custom_call.1} parent=1 // pred_check_branch
      %42 = sbr.rel (0) target = $region13
    $region12: #{tpu_custom_call.1} parent=1 // pred_region
      _
    $region13: #{tpu_custom_call.1} parent=1 // pred_fallthru
      _
    // Predicated region
    $region14: #{tpu_custom_call.1} parent=1 // pred_check
      _
    $region15: #{tpu_custom_call.1} parent=1 // pred_check_branch
      %44 = sbr.rel (0) target = $region17
    $region16: #{tpu_custom_call.1} parent=1 // pred_region
      %46 = vsyncadd [#allocation6], 0
      %s47 = sshll.u32 %s3, 4
      %s48 = int_to_ptr.hbm [resolvable:$true] %s47
      %s49 = sshll.u32 [#allocation7], 4
      %s50 = int_to_ptr.vmem [resolvable:$true] %s49
      %55 = dma.hbm_to_vmem [thread:$0]  %s48, 512, %s50, [#allocation6], 128, 128, 8
    $region17: #{tpu_custom_call.1} parent=1 // pred_fallthru
      _
    // Predicated region
    $region18: #{tpu_custom_call.1} parent=1 // pred_check
      _
    $region19: #{tpu_custom_call.1} parent=1 // pred_check_branch
      %57 = sbr.rel (0) target = $region21
    $region20: #{tpu_custom_call.1} parent=1 // pred_region
      %59 = vsyncadd [#allocation9], 0
      %s60 = sshll.u32 %s4, 4
      %s61 = int_to_ptr.hbm [resolvable:$true] %s60
      %s62 = sshll.u32 [#allocation8], 4
      %s63 = int_to_ptr.vmem [resolvable:$true] %s62
      %68 = dma.hbm_to_vmem [thread:$0]  %s61, 512, %s63, [#allocation9], 128, 128, 8
    $region21: #{tpu_custom_call.1} parent=1 // pred_fallthru
      _
    // Predicated region
    $region22: #{tpu_custom_call.1} parent=1 // pred_check
      _
    $region23: #{tpu_custom_call.1} parent=1 // pred_check_branch
      %70 = sbr.rel (0) target = $region25
    $region24: #{tpu_custom_call.1} parent=1 // pred_region
      _
    $region25: #{tpu_custom_call.1} parent=1 // pred_fallthru
      _
    // Predicated region
    $region26: #{tpu_custom_call.1} parent=1 // pred_check
      _
    $region27: #{tpu_custom_call.1} parent=1 // pred_check_branch
      %72 = sbr.rel (0) target = $region29
    $region28: #{tpu_custom_call.1} parent=1 // pred_region
      %74 = dma.done [#allocation3], 512
    $region29: #{tpu_custom_call.1} parent=1 // pred_fallthru
      _
    // Predicated region
    $region30: #{tpu_custom_call.1} parent=1 // pred_check
      _
    $region31: #{tpu_custom_call.1} parent=1 // pred_check_branch
      %76 = sbr.rel (0) target = $region33
    $region32: #{tpu_custom_call.1} parent=1 // pred_region
      %78 = dma.done [#allocation6], 512
    $region33: #{tpu_custom_call.1} parent=1 // pred_fallthru
      _
    // Predicated region
    $region34: #{tpu_custom_call.1} parent=1 // pred_check
      _
    $region35: #{tpu_custom_call.1} parent=1 // pred_check_branch
      %80 = sbr.rel (0) target = $region37
    $region36: #{tpu_custom_call.1} parent=1 // pred_region
      %82 = dma.done [#allocation6], 512
    $region37: #{tpu_custom_call.1} parent=1 // pred_fallthru
      _
    // Predicated region
    $region38: #{tpu_custom_call.1} parent=1 // pred_check
      _
    $region39: #{tpu_custom_call.1} parent=1 // pred_check_branch
      %84 = sbr.rel (0) target = $region41
    $region40: #{tpu_custom_call.1} parent=1 // pred_region
      %86 = dma.done [#allocation9], 512
    $region41: #{tpu_custom_call.1} parent=1 // pred_fallthru
      _
    %v87 = vld [vmem:[#allocation2] sm:$0xff]
    %v88 = vld [vmem:[#allocation2 + $0x8] sm:$0xff]
    %v89 = vld [vmem:[#allocation2 + $0x10] sm:$0xff]
    %v90 = vld [vmem:[#allocation2 + $0x18] sm:$0xff]
    %v91 = vld [vmem:[#allocation5] sm:$0xff]
    %v92 = vld [vmem:[#allocation5 + $0x8] sm:$0xff]
    %v93 = vld [vmem:[#allocation5 + $0x10] sm:$0xff]
    %v94 = vld [vmem:[#allocation5 + $0x18] sm:$0xff]
    %v95 = vld [vmem:[#allocation7] sm:$0xff]
    %v96 = vld [vmem:[#allocation7 + $0x8] sm:$0xff]
    %v97 = vld [vmem:[#allocation7 + $0x10] sm:$0xff]
    %v98 = vld [vmem:[#allocation7 + $0x18] sm:$0xff]
    %v99 = vld [vmem:[#allocation8] sm:$0xff]
    %v100 = vld [vmem:[#allocation8 + $0x8] sm:$0xff]
    %v101 = vld [vmem:[#allocation8 + $0x10] sm:$0xff]
    %v102 = vld [vmem:[#allocation8 + $0x18] sm:$0xff]
    %v103 = vmul.f32 %v87, %v95
    %v104 = vmul.f32 %v88, %v96
    %v105 = vmul.f32 %v89, %v97
    %v106 = vmul.f32 %v90, %v98
    %v107 = vmul.f32 %v91, %v99
    %v108 = vmul.f32 %v92, %v100
    %v109 = vmul.f32 %v93, %v101
    %v110 = vmul.f32 %v94, %v102
    %v111 = vadd.f32 %v103, %v107
    %v112 = vadd.f32 %v104, %v108
    %v113 = vadd.f32 %v105, %v109
    %v114 = vadd.f32 %v106, %v110
    %v115 = vadd.f32 %v111, %v112
    %v116 = vadd.f32 %v115, %v113
    %v117 = vadd.f32 %v116, %v114
    %v118 = vrot.slane %v117, 4
    %v119 = vadd.f32 %v117, %v118
    %v120 = vrot.slane %v119, 2
    %v121 = vadd.f32 %v119, %v120
    %v122 = vrot.slane %v121, 1
    %v123 = vadd.f32 %v121, %v122
    %v124 = vld [vmem:[%s2] sm:$0x1]
    %v125 = vadd.f32 %v123, %v124
    %v126 = vld [vmem:[%s5] sm:$0x1]
    %v127 = vadd.f32 %v125, %v126
    %128 = vst [vmem:[#allocation10] sm:$0x1] %v127
    // Predicated region
    $region42: #{tpu_custom_call.1} parent=1 // pred_check
      _
    $region43: #{tpu_custom_call.1} parent=1 // pred_check_branch
      %130 = sbr.rel (0) target = $region45
    $region44: #{tpu_custom_call.1} parent=1 // pred_region
      %132 = vsyncadd [#allocation4], 0
      %s134 = sshll.u32 [#allocation10], 4
      %s135 = int_to_ptr.vmem [resolvable:$true] %s134
      %s136 = sshll.u32 %s6, 4
      %s137 = int_to_ptr.hbm [resolvable:$true] %s136
      %139 = dma.vmem_to_hbm [thread:$0]  %s135, 16, %s137, [#allocation4]
    $region45: #{tpu_custom_call.1} parent=1 // pred_fallthru
      _
    // Predicated region
    $region46: #{tpu_custom_call.1} parent=1 // pred_check
      _
    $region47: #{tpu_custom_call.1} parent=1 // pred_check_branch
      %141 = sbr.rel (0) target = $region49
    $region48: #{tpu_custom_call.1} parent=1 // pred_region
      %143 = dma.done [#allocation4], 16
    $region49: #{tpu_custom_call.1} parent=1 // pred_fallthru
      _
    %144 = vsyncpa [#allocation3], 1
    %145 = vsyncpa [#allocation6], 1
    %146 = vsyncpa [#allocation9], 1
    %147 = vsyncpa [#allocation4], 1

</llo_original>
